<compile_context>
chip_gen: v7x
topology: tpu7x:2x2x1
jax: 0.10.0
libtpu: 0.0.40
codegen_flags: <defaults>
</compile_context>

<pallas_src>
import functools

import jax
import jax.numpy as jnp
from jax.experimental import pallas as pl
from jax.experimental.pallas import tpu as pltpu


def _maxpool_kernel(x_ref, o_ref, *, kernel_size):
    # x_ref: (1, K, C_TILE, OUT_TILE)  — window elements on a leading axis.
    # o_ref: (1, C_TILE, OUT_TILE)     — (sublane, lane)-dense output tile.
    if kernel_size <= 8:
        acc = x_ref[0, 0, :, :]
        for j in range(1, kernel_size):            # static unrolled max chain
            acc = jnp.maximum(acc, x_ref[0, j, :, :])
    else:
        def body(j, acc):
            return jnp.maximum(acc, x_ref[0, j, :, :])
        acc = jax.lax.fori_loop(1, kernel_size, body, x_ref[0, 0, :, :])
    o_ref[0, :, :] = acc


def _pick_tile(dim, max_tile, unit):
    """Full extent if it fits, otherwise the largest multiple of `unit`."""
    if dim <= max_tile:
        return dim
    return max(unit, (max_tile // unit) * unit)


def maxpool1d_pad_same(x, kernel_size, stride_size):
    """SAME-padded max pool, layout NCL, semantics of MyMaxPool1dPadSame."""
    n, c, in_dim = x.shape

    # --- SAME padding computed w.r.t. stride_size (exactly as the module) ---
    out_dim_same = (in_dim + stride_size - 1) // stride_size
    p = max(0, (out_dim_same - 1) * stride_size + kernel_size - in_dim)
    pad_left = p // 2
    pad_right = p - pad_left
    x_pad = jnp.pad(x, ((0, 0), (0, 0), (pad_left, pad_right)),
                    constant_values=0)             # zero pad, like F.pad constant 0
    padded_len = in_dim + p

    # --- nn.MaxPool1d(kernel_size=k) -> stride == k (PyTorch default) ---
    out_len = (padded_len - kernel_size) // kernel_size + 1

    # Host-side glue: trim the unused tail and expose the pooling windows with
    # the window axis LEADING -> (N, K, C, OUT), so the kernel block keeps
    # (C_TILE, OUT_TILE) as its dense (sublane, lane) dims.
    x_win = x_pad[:, :, : out_len * kernel_size]
    x_win = x_win.reshape(n, c, out_len, kernel_size).transpose(0, 3, 1, 2)

    # Tile sizes: lane tiles multiples of 128 (<= 1024), sublane tiles
    # multiples of 8 (<= 128); cap the double-buffered input block to a few
    # MiB so it fits comfortably on v5e / v6e / v7x scoped-VMEM defaults.
    itemsize = jnp.dtype(x.dtype).itemsize
    c_tile = _pick_tile(c, 128, 8)
    vmem_budget = 6 * 1024 * 1024                  # input block, double-buffered
    max_out = max(128, vmem_budget // (2 * kernel_size * c_tile * itemsize))
    out_tile = _pick_tile(out_len, min(1024, max_out), 128)

    grid = (n, pl.cdiv(c, c_tile), pl.cdiv(out_len, out_tile))

    kernel = functools.partial(_maxpool_kernel, kernel_size=kernel_size)
    return pl.pallas_call(
        kernel,
        out_shape=jax.ShapeDtypeStruct((n, c, out_len), x.dtype),
        grid_spec=pltpu.PrefetchScalarGridSpec(
            num_scalar_prefetch=0,
            grid=grid,
            in_specs=[pl.BlockSpec((1, kernel_size, c_tile, out_tile),
                                   lambda b, ci, oi: (b, 0, ci, oi))],
            out_specs=pl.BlockSpec((1, c_tile, out_tile),
                                   lambda b, ci, oi: (b, ci, oi)),
        ),
        compiler_params=pltpu.CompilerParams(
            dimension_semantics=("parallel", "parallel", "parallel")),
    )(x_win)


def _reference(x, kernel_size, stride_size):
    """Pure-JAX reference with identical semantics (for verification)."""
    n, c, in_dim = x.shape
    out_dim_same = (in_dim + stride_size - 1) // stride_size
    p = max(0, (out_dim_same - 1) * stride_size + kernel_size - in_dim)
    pad_left = p // 2
    pad_right = p - pad_left
    x_pad = jnp.pad(x, ((0, 0), (0, 0), (pad_left, pad_right)),
                    constant_values=0)
    padded_len = in_dim + p
    out_len = (padded_len - kernel_size) // kernel_size + 1
    x_w = x_pad[:, :, : out_len * kernel_size].reshape(n, c, out_len,
                                                       kernel_size)
    return x_w.max(axis=-1)


if __name__ == "__main__":
    # Module hyperparameters (deterministic, in-script).
    kernel_size = 3
    stride_size = 2

    # Small deterministic input: batch=2, channels=4, length=16, layout NCL.
    key = jax.random.PRNGKey(0)
    x = jax.random.normal(key, (2, 4, 16), dtype=jnp.float32)

    out = maxpool1d_pad_same(x, kernel_size, stride_size)
    out = jax.block_until_ready(out)

    ref = _reference(x, kernel_size, stride_size)
    assert out.shape == ref.shape, (out.shape, ref.shape)
    assert jnp.allclose(out, ref), "Pallas output does not match reference"

    print("KERNEL_OK")
</pallas_src>

<mosaic_0001>
module attributes {stable_mosaic.version = 11 : i64} {
  func.func @_maxpool_kernel(%arg0: i32, %arg1: i32, %arg2: i32, %arg3: memref<1x3x4x5xf32, #tpu.memory_space<vmem>>, %arg4: memref<1x4x5xf32, #tpu.memory_space<vmem>>) attributes {dimension_semantics = [#tpu.dimension_semantics<parallel>, #tpu.dimension_semantics<parallel>, #tpu.dimension_semantics<parallel>], iteration_bounds = array<i64: 2, 1, 1>, scalar_prefetch = 0 : i64, scratch_operands = 0 : i64, tpu.core_type = #tpu.core_type<tc>, window_params = [{transform_indices = @transform_0, window_bounds = array<i64: 1, 3, 4, 5>}, {transform_indices = @transform_1, window_bounds = array<i64: 1, 4, 5>}]} {
    %c0 = arith.constant 0 : index
    %c0_0 = arith.constant 0 : index
    %c0_1 = arith.constant 0 : index
    %c0_2 = arith.constant 0 : index
    %0 = vector.load %arg3[%c0, %c0_0, %c0_1, %c0_2] : memref<1x3x4x5xf32, #tpu.memory_space<vmem>>, vector<1x1x4x5xf32>
    %1 = vector.shape_cast %0 : vector<1x1x4x5xf32> to vector<4x5xf32>
    %c0_3 = arith.constant 0 : index
    %c1 = arith.constant 1 : index
    %c0_4 = arith.constant 0 : index
    %c0_5 = arith.constant 0 : index
    %2 = vector.load %arg3[%c0_3, %c1, %c0_4, %c0_5] : memref<1x3x4x5xf32, #tpu.memory_space<vmem>>, vector<1x1x4x5xf32>
    %3 = vector.shape_cast %2 : vector<1x1x4x5xf32> to vector<4x5xf32>
    %4 = arith.maximumf %1, %3 : vector<4x5xf32>
    %c0_6 = arith.constant 0 : index
    %c2 = arith.constant 2 : index
    %c0_7 = arith.constant 0 : index
    %c0_8 = arith.constant 0 : index
    %5 = vector.load %arg3[%c0_6, %c2, %c0_7, %c0_8] : memref<1x3x4x5xf32, #tpu.memory_space<vmem>>, vector<1x1x4x5xf32>
    %6 = vector.shape_cast %5 : vector<1x1x4x5xf32> to vector<4x5xf32>
    %7 = arith.maximumf %4, %6 : vector<4x5xf32>
    %c0_9 = arith.constant 0 : index
    %c0_10 = arith.constant 0 : index
    %c0_11 = arith.constant 0 : index
    %8 = vector.load %arg4[%c0_9, %c0_10, %c0_11] : memref<1x4x5xf32, #tpu.memory_space<vmem>>, vector<1x4x5xf32>
    %9 = vector.shape_cast %8 : vector<1x4x5xf32> to vector<4x5xf32>
    %10 = vector.shape_cast %7 : vector<4x5xf32> to vector<1x4x5xf32>
    tpu.vector_store %arg4[%c0_9, %c0_10, %c0_11], %10 {strides = array<i32>} : memref<1x4x5xf32, #tpu.memory_space<vmem>>, vector<1x4x5xf32>,
    return
  }
  func.func @transform_0(%arg0: i32, %arg1: i32, %arg2: i32) -> (i32, i32, i32, i32) {
    %c0_i32 = arith.constant 0 : i32
    %c0_i32_0 = arith.constant 0 : i32
    return %arg0, %c0_i32, %arg1, %arg2 : i32, i32, i32, i32
  }
  func.func @transform_1(%arg0: i32, %arg1: i32, %arg2: i32) -> (i32, i32, i32) {
    %c0_i32 = arith.constant 0 : i32
    return %arg0, %arg1, %arg2 : i32, i32, i32
  }
}

</mosaic_0001>

<llo_original>
// kernel: tpu_custom_call.1
$region0: #{tpu_custom_call.1}
  #allocation0 [shape = 'u32[]', space=smem, size = 0x4, offset = 0x4, fixed_abs, tag = 'smem constant byte address 0x4 - core index']
  #allocation1 [shape = 'u32[144,128]{1,0:T(1,128)}', space=vmem, size = 0x12000, scoped, tag = 'internal scratch']
  %s0 = inlined_call_operand.hbm [shape: f32[2,3,4,5], index: 0, kind: input, shape index: {}]
  %s1 = inlined_call_operand.hbm [shape: f32[2,4,5], index: 1, kind: output, shape index: {}]
  %s2 = sld [smem:[#allocation0]]
  $region41: #{tpu_custom_call.1} parent=0
    _
  %s4 = ssub.s32 1, %s2
  %s5 = scalar_select 0, %s4, %s2
  $region1: #{tpu_custom_call.1} parent=0
    #allocation2 [shape = 'u8[12288]{0}', space=vmem, size = 0x3000, scoped, tag = 'input window, operand 0']
    #allocation3 [shape = 's32[2]{0}', space=sflag, size = 0x8, scoped, tag = 'scoped memory for tpu_custom_call.1']
    #allocation4 [shape = 's32[2]{0}', space=sflag, size = 0x8, scoped, tag = 'scoped memory for tpu_custom_call.1']
    #allocation5 [shape = 'u8[4096]{0}', space=vmem, size = 0x1000, scoped, tag = 'output window, operand 0']
    %6 = vsyncpa [#allocation3], 0
    %s7 = scalar_lea.sflag [#allocation3], 1
    %8 = vsyncpa %s7, 0
    %9 = vsyncpa [#allocation4], 0
    %s10 = scalar_lea.sflag [#allocation4], 1
    %11 = vsyncpa %s10, 0
    loop: start=0, step=1, limit=4
    $region2: #{tpu_custom_call.1} parent=1 // loop_pre_header
      _
    $region3: #{tpu_custom_call.1} parent=1 // loop_header
      %s13 = sphi 0, %s17
      %p14 = scmp.ge.s32.totalorder %s13, 4
      %s20 = sphi 0, %s39
      %s21 = sphi 0, %s35
      %s22 = sphi 0, %s31
      %s23 = sphi 0, %s20
      %s24 = sphi 0, %s21
      %s25 = sphi 0, %s22
      %s26 = sphi 0, %s23
      %s27 = sphi 0, %s24
      %s28 = sphi 0, %s25
      %s46 = sphi 0, %s48
      %s49 = sphi 0, %s46
      %s50 = sphi 0, %s49
      %s66 = sphi 0, %s50
      %s76 = sphi 0, %s78
      %s79 = sphi 0, %s76
      %s80 = sphi 0, %s79
      %s96 = sphi 0, %s80
    $region4: #{tpu_custom_call.1} parent=1 // loop_header_branch
      %16 = sbr.rel (%p14) target = $region8
    $region5: #{tpu_custom_call.1} parent=1 // loop_body
      %s18 = ssub.s32 %s13, 1
      %s19 = ssub.s32 %s13, 2
      %s29 = sadd.s32 1, %s22
      %p30 = scmp.ge.s32.totalorder %s29, 1
      %s31 = scalar_select %p30, 0, %s29
      %s32 = sadd.s32 1, %s21
      %s33 = scalar_select %p30, %s32, %s21
      %p34 = scmp.ge.s32.totalorder %s33, 1
      %s35 = scalar_select %p34, 0, %s33
      %s36 = sadd.s32 1, %s20
      %s37 = scalar_select %p34, %s36, %s20
      %p38 = scmp.ge.s32.totalorder %s37, 2
      %s39 = scalar_select %p38, 0, %s37
      %s40 = ssub.s32 %s20, %s39
      %s41 = ssub.s32 %s21, %s35
      %s42 = sor.u32 %s40, %s41
      %s43 = ssub.s32 %s22, %s31
      %s44 = sor.u32 %s42, %s43
      %p45 = scmp.eq.s32.totalorder %s44, 0
      %s47 = sadd.s32 %s46, 1
      %s48 = scalar_select %p45, %s46, %s47
      %p51 = pneg %p45
      %p52 = scmp.eq.s32.totalorder %s13, 1
      %p53 = por %p51, %p52
      %p54 = scmp.ne.s32.totalorder %s46, %s49
      %p55 = scmp.eq.s32.totalorder %s13, 0
      %p56 = por %p54, %p55
      %p57 = scmp.ne.s32.totalorder %s46, %s49
      %p58 = scmp.eq.s32.totalorder %s18, 1
      %p59 = por %p57, %p58
      %p60 = scmp.ne.s32.totalorder %s49, %s50
      %p61 = scmp.eq.s32.totalorder %s18, 0
      %p62 = por %p60, %p61
      %p63 = scmp.ne.s32.totalorder %s49, %s50
      %p64 = scmp.eq.s32.totalorder %s19, 1
      %p65 = por %p63, %p64
      %p67 = scmp.ne.s32.totalorder %s50, %s66
      %p68 = scmp.eq.s32.totalorder %s19, 0
      %p69 = por %p67, %p68
      %s70 = ssub.s32 %s20, %s39
      %s71 = ssub.s32 %s21, %s35
      %s72 = sor.u32 %s70, %s71
      %s73 = ssub.s32 %s22, %s31
      %s74 = sor.u32 %s72, %s73
      %p75 = scmp.eq.s32.totalorder %s74, 0
      %s77 = sadd.s32 %s76, 1
      %s78 = scalar_select %p75, %s76, %s77
      %p81 = pneg %p75
      %p82 = scmp.eq.s32.totalorder %s13, 1
      %p83 = por %p81, %p82
      %p84 = scmp.ne.s32.totalorder %s76, %s79
      %p85 = scmp.eq.s32.totalorder %s13, 0
      %p86 = por %p84, %p85
      %p87 = scmp.ne.s32.totalorder %s76, %s79
      %p88 = scmp.eq.s32.totalorder %s18, 1
      %p89 = por %p87, %p88
      %p90 = scmp.ne.s32.totalorder %s79, %s80
      %p91 = scmp.eq.s32.totalorder %s18, 0
      %p92 = por %p90, %p91
      %p93 = scmp.ne.s32.totalorder %s79, %s80
      %p94 = scmp.eq.s32.totalorder %s19, 1
      %p95 = por %p93, %p94
      %p97 = scmp.ne.s32.totalorder %s80, %s96
      %p98 = scmp.eq.s32.totalorder %s19, 0
      %p99 = por %p97, %p98
      %p100 = scmp.le.s32.totalorder 1, %s13
      %p101 = scmp.lt.s32.totalorder %s13, 3
      %p102 = pnand %p100, %p101
      %p103 = pneg %p102
      // Predicated region
      $region9: #{tpu_custom_call.1} parent=5 // pred_check
        _
      $region10: #{tpu_custom_call.1} parent=5 // pred_check_branch
        %105 = sbr.rel (%p102) target = $region12
      $region11: #{tpu_custom_call.1} parent=5 // pred_region
        %s106 = ssub.s32 %s13, 1
      $region12: #{tpu_custom_call.1} parent=5 // pred_fallthru
        _
      %p107 = scmp.lt.s32.totalorder %s13, 2
      // Predicated region
      $region13: #{tpu_custom_call.1} parent=5 // pred_check
        %p108 = pneg %p107
      $region14: #{tpu_custom_call.1} parent=5 // pred_check_branch
        %110 = sbr.rel (%p108) target = $region16
      $region15: #{tpu_custom_call.1} parent=5 // pred_region
        // Predicated region
        $region17: #{tpu_custom_call.1} parent=15 // pred_check
          %p111 = pneg %p56
        $region18: #{tpu_custom_call.1} parent=15 // pred_check_branch
          %113 = sbr.rel (%p111) target = $region20
        $region19: #{tpu_custom_call.1} parent=15 // pred_region
          %s114 = sand.u32 %s46, 1
          %s115 = scalar_lea.sflag [#allocation3], %s114
          %s116 = sand.u32 %s46, 1
          %s117 = smul.addr %s116, 12
          %s118 = scalar_lea.vmem [#allocation2], %s117
          %s120 = ssub.s32 192, 192
          %121 = vsyncadd %s115, %s120
          %s122 = sadd.s32 %s22, %s21
          %s123 = smul.addr %s20, 3
          %s124 = sadd.s32 %s122, %s123
          %s125 = smul.addr %s124, 64
          %s126 = scalar_lea.hbm %s0, %s125
          %s127 = sshll.u32 %s118, 4
          %s128 = int_to_ptr.vmem [resolvable:$true] %s127
          %133 = dma.hbm_to_vmem [thread:$0]  %s126, 192, %s128, %s115, 64, 64, 4
        $region20: #{tpu_custom_call.1} parent=15 // pred_fallthru
          _
      $region16: #{tpu_custom_call.1} parent=5 // pred_fallthru
        _
      %p134 = scmp.le.s32.totalorder 1, %s13
      %p135 = scmp.lt.s32.totalorder %s13, 3
      %p136 = pnand %p134, %p135
      %p137 = pneg %p136
      // Predicated region
      $region21: #{tpu_custom_call.1} parent=5 // pred_check
        _
      $region22: #{tpu_custom_call.1} parent=5 // pred_check_branch
        %139 = sbr.rel (%p136) target = $region24
      $region23: #{tpu_custom_call.1} parent=5 // pred_region
        %s140 = ssub.s32 %s13, 1
        %s141 = sand.u32 %s49, 1
        %s142 = scalar_lea.sflag [#allocation3], %s141
        %s143 = sand.u32 %s49, 1
        %s144 = smul.addr %s143, 12
        %s145 = scalar_lea.vmem [#allocation2], %s144
        // Predicated region
        $region25: #{tpu_custom_call.1} parent=23 // pred_check
          %p146 = pneg %p62
        $region26: #{tpu_custom_call.1} parent=23 // pred_check_branch
          %148 = sbr.rel (%p146) target = $region28
        $region27: #{tpu_custom_call.1} parent=23 // pred_region
          %149 = dma.done %s142, 192
        $region28: #{tpu_custom_call.1} parent=23 // pred_fallthru
          _
        %s150 = sand.u32 %s49, 1
        %s151 = scalar_lea.sflag [#allocation3], %s150
        %s152 = sand.u32 %s49, 1
        %s153 = smul.addr %s152, 12
        %s154 = scalar_lea.vmem [#allocation2], %s153
        %p155 = pneg %p62
        %p156 = pneg %p59
        %p157 = pneg %p92
        %p158 = pneg %p89
        %s159 = sand.u32 %s79, 1
        %s160 = scalar_lea.sflag [#allocation4], %s159
        %s161 = sand.u32 %s79, 1
        %s162 = smul.addr %s161, 4
        %s163 = scalar_lea.vmem [#allocation5], %s162
        %v164 = vld [vmem:[%s145] sm:$0xf]
        %s165 = scalar_lea.vmem %s145, 4 [#allocation2]
        %v166 = vld [vmem:[%s165] sm:$0xf]
        %v167 = vmax.f32 %v164, %v166
        %s168 = scalar_lea.vmem %s145, 8 [#allocation2]
        %v169 = vld [vmem:[%s168] sm:$0xf]
        %v170 = vmax.f32 %v167, %v169
        %vm171 = vcmask 35840
        %172 = vst.msk [vmem:[%s163] sm:$0xf] %vm171, %v170
        %s173 = sand.u32 %s79, 1
        %s174 = scalar_lea.sflag [#allocation4], %s173
        %s175 = sand.u32 %s79, 1
        %s176 = smul.addr %s175, 4
        %s177 = scalar_lea.vmem [#allocation5], %s176
        // Predicated region
        $region29: #{tpu_custom_call.1} parent=23 // pred_check
          %p178 = pneg %p89
        $region30: #{tpu_custom_call.1} parent=23 // pred_check_branch
          %180 = sbr.rel (%p178) target = $region32
        $region31: #{tpu_custom_call.1} parent=23 // pred_region
          %s182 = ssub.s32 64, 64
          %183 = vsyncadd %s174, %s182
          %s184 = sadd.s32 %s25, %s24
          %s185 = sadd.s32 %s184, %s23
          %s186 = smul.addr %s185, 64
          %s187 = scalar_lea.hbm %s1, %s186
          %s189 = sshll.u32 %s177, 4
          %s190 = int_to_ptr.vmem [resolvable:$true] %s189
          %192 = dma.vmem_to_hbm [thread:$0]  %s190, 64, %s187, %s174
        $region32: #{tpu_custom_call.1} parent=23 // pred_fallthru
          _
      $region24: #{tpu_custom_call.1} parent=5 // pred_fallthru
        _
      %p193 = scmp.le.s32.totalorder 2, %s13
      // Predicated region
      $region33: #{tpu_custom_call.1} parent=5 // pred_check
        %p194 = pneg %p193
      $region34: #{tpu_custom_call.1} parent=5 // pred_check_branch
        %196 = sbr.rel (%p194) target = $region36
      $region35: #{tpu_custom_call.1} parent=5 // pred_region
        %s197 = ssub.s32 %s13, 2
        // Predicated region
        $region37: #{tpu_custom_call.1} parent=35 // pred_check
          %p198 = pneg %p95
        $region38: #{tpu_custom_call.1} parent=35 // pred_check_branch
          %200 = sbr.rel (%p198) target = $region40
        $region39: #{tpu_custom_call.1} parent=35 // pred_region
          %s201 = sand.u32 %s80, 1
          %s202 = scalar_lea.sflag [#allocation4], %s201
          %s203 = sand.u32 %s80, 1
          %s204 = smul.addr %s203, 4
          %s205 = scalar_lea.vmem [#allocation5], %s204
          %206 = dma.done %s202, 64
        $region40: #{tpu_custom_call.1} parent=35 // pred_fallthru
          _
      $region36: #{tpu_custom_call.1} parent=5 // pred_fallthru
        _
    $region6: #{tpu_custom_call.1} parent=1 // loop_footer
      %s17 = sadd.s32 1, %s13
    $region7: #{tpu_custom_call.1} parent=1 // loop_footer_branch
      %12 = sbr.rel target = $region3
    $region8: #{tpu_custom_call.1} parent=1 // loop_exit
      _
    %207 = vsyncpa [#allocation3], 1
    %s208 = scalar_lea.sflag [#allocation3], 1
    %209 = vsyncpa %s208, 1
    %210 = vsyncpa [#allocation4], 1
    %s211 = scalar_lea.sflag [#allocation4], 1
    %212 = vsyncpa %s211, 1

</llo_original>
